<compile_context>
chip_gen: v5e
topology: v5e:2x2
jax: 0.10.0
libtpu: 0.0.40
codegen_flags: <defaults>
</compile_context>

<pallas_src>
import functools
import math

import jax
import jax.numpy as jnp
from jax.experimental import pallas as pl
from jax.experimental.pallas import tpu as pltpu


def _round_up(v, m):
    return ((v + m - 1) // m) * m


def _pad_dim(d):
    # Only lane-pad when it buys something: dims <= 128 stay as-is (full-array
    # blocks are legal; Mosaic masks the partial lanes), larger dims round up
    # to a multiple of 128 so MXU tiles and the output store are lane-dense.
    return d if d <= 128 else _round_up(d, 128)


def _fused_mlp_kernel(x_ref, *refs, num_layers, compute_dtype):
    """Whole-MLP fused kernel for one batch tile.

    x_ref : (TM, D0p)                 VMEM, caller dtype
    refs  : w0, b0, ..., w_{L-1}, b_{L-1}, o_ref
      w_l : (D_l_p, D_{l+1}_p)        VMEM, compute_dtype (bf16), grid-resident
      b_l : (1, D_{l+1}_p)            VMEM, f32
      o_ref: (TM, D_L_p)              VMEM, caller dtype

    All intermediate activations stay on-chip; the MXU is fed compute_dtype
    operands with f32 accumulation, bias add (VPU) and tanh (EUP) run in f32.
    """
    o_ref = refs[-1]
    h = x_ref[...]
    for l in range(num_layers):
        w = refs[2 * l][...]
        b = refs[2 * l + 1][...]
        h = jnp.dot(h.astype(compute_dtype), w,
                    preferred_element_type=jnp.float32) + b
        if l < num_layers - 1:
            h = jnp.tanh(h)
    o_ref[...] = h.astype(o_ref.dtype)


def _resident_spec(shape):
    """BlockSpec for a grid-invariant (VMEM-resident) parameter tile."""
    index_map = lambda i: (0, 0)
    try:
        # Single-buffered: the second pipeline buffer would be pure VMEM waste
        # for a constant index_map.
        return pl.BlockSpec(shape, index_map, pipeline_mode=pl.Buffered(1))
    except TypeError:  # older jax without pipeline_mode on BlockSpec
        return pl.BlockSpec(shape, index_map)


def make_mlp(params, in_dim, *, compute_dtype=jnp.bfloat16, batch_tile=512):
    """Build a jitted fused-MLP forward.

    The returned callable computes y = Linear -> tanh -> ... -> Linear(x),
    numerically matching PyTorch nn.Linear (y = x @ W + b, W stored (in, out)),
    with the matmuls fed to the MXU in `compute_dtype` (f32 accumulation).
    Weight padding / casting happens ONCE here, not per forward call.
    """
    num_layers = len(params)
    dims = [int(in_dim)] + [int(w.shape[1]) for w, _ in params]
    dims_p = [_pad_dim(d) for d in dims]
    out_dim = dims[-1]
    comp_bytes = jnp.dtype(compute_dtype).itemsize

    # ---- one-time parameter padding + casting (zero pad is mathematically
    # inert: zero rows/cols, tanh(0)=0) ---------------------------------------
    flat_params = []
    param_specs = []
    for l, (w, b) in enumerate(params):
        din, dout = w.shape
        w_p = jnp.pad(w, ((0, dims_p[l] - din),
                          (0, dims_p[l + 1] - dout))).astype(compute_dtype)
        b_p = jnp.pad(b, (0, dims_p[l + 1] - dout)).astype(jnp.float32)
        b_p = b_p.reshape(1, dims_p[l + 1])
        flat_params += [w_p, b_p]
        param_specs.append(_resident_spec((dims_p[l], dims_p[l + 1])))
        param_specs.append(_resident_spec((1, dims_p[l + 1])))

    # ---- VMEM budget ---------------------------------------------------------
    tm_max = _round_up(max(8, int(batch_tile)), 8)
    weight_vmem = sum(dims_p[l] * dims_p[l + 1] for l in range(num_layers)) * comp_bytes
    bias_vmem = sum(dims_p[1:]) * 4
    io_vmem = 2 * tm_max * (dims_p[0] + dims_p[-1]) * 4     # double-buffered x/out tiles
    act_vmem = 2 * tm_max * max(dims_p) * 4                  # in-flight intermediates
    footprint = weight_vmem + bias_vmem + io_vmem + act_vmem

    try:
        vmem_cap = int(pltpu.get_tpu_info().vmem_capacity_bytes)
    except Exception:
        vmem_cap = 64 << 20  # most conservative (v7x per-TC)

    budget = int(0.85 * vmem_cap)
    if footprint > budget:
        # TODO(synk): fall back to tiling the output-feature axis (grid over N)
        # or pltpu.emit_pipeline over K per layer instead of failing here.
        raise ValueError(
            f"Fused MLP needs ~{footprint >> 20} MiB resident VMEM "
            f"(> {budget >> 20} MiB budget on this chip); reduce dims or batch_tile.")

    vmem_limit = int(min(128 << 20, int(0.9 * vmem_cap),
                         max(32 << 20, 2 * footprint)))

    matmul_flops_per_row = sum(dims_p[l] * dims_p[l + 1] for l in range(num_layers))
    weight_bytes = weight_vmem + bias_vmem

    kernel = functools.partial(_fused_mlp_kernel,
                               num_layers=num_layers,
                               compute_dtype=compute_dtype)

    @jax.jit
    def _forward(x, *flat):
        B, D0 = x.shape
        assert D0 == dims[0], f"expected input dim {dims[0]}, got {D0}"

        # Batch tile: multiple of 8 (sublane rule), at most batch_tile.
        tm = _round_up(max(8, min(int(batch_tile), _round_up(B, 8))), 8)
        b_pad = _round_up(B, tm)

        pad_b, pad_f = b_pad - B, dims_p[0] - D0
        x_p = x if (pad_b == 0 and pad_f == 0) else jnp.pad(x, ((0, pad_b), (0, pad_f)))

        in_specs = [pl.BlockSpec((tm, dims_p[0]), lambda i: (i, 0))] + param_specs
        out_spec = pl.BlockSpec((tm, dims_p[-1]), lambda i: (i, 0))

        flops = 2 * b_pad * matmul_flops_per_row
        transcendentals = b_pad * sum(dims_p[1:-1])
        bytes_accessed = (x_p.dtype.itemsize * b_pad * dims_p[0]
                          + weight_bytes
                          + x.dtype.itemsize * b_pad * dims_p[-1])

        out_p = pl.pallas_call(
            kernel,
            out_shape=jax.ShapeDtypeStruct((b_pad, dims_p[-1]), x.dtype),
            grid=(b_pad // tm,),
            in_specs=in_specs,
            out_specs=out_spec,
            compiler_params=pltpu.CompilerParams(
                # Batch axis is independent work: shardable across v7x's 2 TCs,
                # harmless on single-TC v5e/v6e.
                dimension_semantics=("parallel",),
                vmem_limit_bytes=vmem_limit,
            ),
            cost_estimate=pl.CostEstimate(
                flops=int(flops),
                transcendentals=int(transcendentals),
                bytes_accessed=int(bytes_accessed),
            ),
        )(x_p, *flat)

        return out_p[:B, :out_dim]

    def forward(x):
        return _forward(x, *flat_params)

    return forward


def init_mlp_params(key, dims):
    """Deterministic parameter init mirroring nn.Linear's default
    (uniform in [-1/sqrt(in_dim), 1/sqrt(in_dim)])."""
    params = []
    for in_dim, out_dim in zip(dims[:-1], dims[1:]):
        key, kw, kb = jax.random.split(key, 3)
        bound = 1.0 / math.sqrt(in_dim)
        w = jax.random.uniform(kw, (in_dim, out_dim), dtype=jnp.float32,
                               minval=-bound, maxval=bound)
        b = jax.random.uniform(kb, (out_dim,), dtype=jnp.float32,
                               minval=-bound, maxval=bound)
        params.append((w, b))
    return params


def mlp_reference(x, params, compute_dtype=jnp.float32):
    """Pure-JAX reference of the same forward pass (for sanity checking).

    With compute_dtype=bf16 it mirrors the kernel's bf16-MXU-feed / f32-accum
    numerics; with f32 it is the exact module semantics."""
    h = x
    for i, (w, b) in enumerate(params):
        h = jnp.dot(h.astype(compute_dtype), w.astype(compute_dtype),
                    preferred_element_type=jnp.float32) + b.astype(jnp.float32)
        if i < len(params) - 1:
            h = jnp.tanh(h)
    return h.astype(x.dtype)


if __name__ == "__main__":
    # Small shapes consistent with the module: dims=[32, 64, 64, 16], batch=8.
    dims = [32, 64, 64, 16]
    batch = 8

    key = jax.random.PRNGKey(0)
    key, kx = jax.random.split(key)
    x = jax.random.normal(kx, (batch, dims[0]), dtype=jnp.float32)

    params = init_mlp_params(key, dims)

    fwd = make_mlp(params, dims[0])          # one-time pad/cast of all weights
    y = jax.block_until_ready(fwd(x))

    y_ref_matched = mlp_reference(x, params, compute_dtype=jnp.bfloat16)
    y_ref_exact = mlp_reference(x, params, compute_dtype=jnp.float32)

    assert y.shape == (batch, dims[-1])
    assert y.dtype == x.dtype
    # Matches the bf16-feed / f32-accumulate numerics tightly...
    assert jnp.allclose(y, y_ref_matched, atol=1e-3, rtol=1e-3)
    # ...and the exact f32 module semantics within bf16 tolerance.
    assert jnp.allclose(y, y_ref_exact, atol=5e-2, rtol=5e-2)

    print("KERNEL_OK")
</pallas_src>

<mosaic_0001>
module attributes {stable_mosaic.version = 11 : i64} {
  func.func @_fused_mlp_kernel(%arg0: i32, %arg1: memref<8x32xf32, #tpu.memory_space<vmem>>, %arg2: memref<32x64xbf16, #tpu.memory_space<vmem>>, %arg3: memref<1x64xf32, #tpu.memory_space<vmem>>, %arg4: memref<64x64xbf16, #tpu.memory_space<vmem>>, %arg5: memref<1x64xf32, #tpu.memory_space<vmem>>, %arg6: memref<64x16xbf16, #tpu.memory_space<vmem>>, %arg7: memref<1x16xf32, #tpu.memory_space<vmem>>, %arg8: memref<8x16xf32, #tpu.memory_space<vmem>>) attributes {dimension_semantics = [#tpu.dimension_semantics<parallel>], iteration_bounds = array<i64: 1>, scalar_prefetch = 0 : i64, scratch_operands = 0 : i64, tpu.core_type = #tpu.core_type<tc>, window_params = [{transform_indices = @transform_0, window_bounds = array<i64: 8, 32>}, {pipeline_mode = #tpu.pipeline_mode<synchronous>, transform_indices = @transform_1, window_bounds = array<i64: 32, 64>}, {pipeline_mode = #tpu.pipeline_mode<synchronous>, transform_indices = @transform_2, window_bounds = array<i64: 1, 64>}, {pipeline_mode = #tpu.pipeline_mode<synchronous>, transform_indices = @transform_3, window_bounds = array<i64: 64, 64>}, {pipeline_mode = #tpu.pipeline_mode<synchronous>, transform_indices = @transform_4, window_bounds = array<i64: 1, 64>}, {pipeline_mode = #tpu.pipeline_mode<synchronous>, transform_indices = @transform_5, window_bounds = array<i64: 64, 16>}, {pipeline_mode = #tpu.pipeline_mode<synchronous>, transform_indices = @transform_6, window_bounds = array<i64: 1, 16>}, {transform_indices = @transform_7, window_bounds = array<i64: 8, 16>}]} {
    %c0 = arith.constant 0 : index
    %c0_0 = arith.constant 0 : index
    %0 = vector.load %arg1[%c0, %c0_0] : memref<8x32xf32, #tpu.memory_space<vmem>>, vector<8x32xf32>
    %c0_1 = arith.constant 0 : index
    %c0_2 = arith.constant 0 : index
    %1 = vector.load %arg2[%c0_1, %c0_2] : memref<32x64xbf16, #tpu.memory_space<vmem>>, vector<32x64xbf16>
    %c0_3 = arith.constant 0 : index
    %c0_4 = arith.constant 0 : index
    %2 = vector.load %arg3[%c0_3, %c0_4] : memref<1x64xf32, #tpu.memory_space<vmem>>, vector<1x64xf32>
    %3 = arith.truncf %0 : vector<8x32xf32> to vector<8x32xbf16>
    %cst = arith.constant dense<0.000000e+00> : vector<8x64xf32>
    %4 = tpu.matmul %3, %1, %cst {dimension_numbers = #tpu.dot_dimension_numbers<[1], [0], [0], [1], [0, 0, 1, 1], [], []>} : vector<8x32xbf16>, vector<32x64xbf16>, vector<8x64xf32> -> vector<8x64xf32>
    %5 = vector.broadcast %2 : vector<1x64xf32> to vector<8x64xf32>
    %6 = arith.addf %4, %5 : vector<8x64xf32>
    %7 = math.tanh %6 : vector<8x64xf32>
    %c0_5 = arith.constant 0 : index
    %c0_6 = arith.constant 0 : index
    %8 = vector.load %arg4[%c0_5, %c0_6] : memref<64x64xbf16, #tpu.memory_space<vmem>>, vector<64x64xbf16>
    %c0_7 = arith.constant 0 : index
    %c0_8 = arith.constant 0 : index
    %9 = vector.load %arg5[%c0_7, %c0_8] : memref<1x64xf32, #tpu.memory_space<vmem>>, vector<1x64xf32>
    %10 = arith.truncf %7 : vector<8x64xf32> to vector<8x64xbf16>
    %cst_9 = arith.constant dense<0.000000e+00> : vector<8x64xf32>
    %11 = tpu.matmul %10, %8, %cst_9 {dimension_numbers = #tpu.dot_dimension_numbers<[1], [0], [0], [1], [0, 0, 1, 1], [], []>} : vector<8x64xbf16>, vector<64x64xbf16>, vector<8x64xf32> -> vector<8x64xf32>
    %12 = vector.broadcast %9 : vector<1x64xf32> to vector<8x64xf32>
    %13 = arith.addf %11, %12 : vector<8x64xf32>
    %14 = math.tanh %13 : vector<8x64xf32>
    %c0_10 = arith.constant 0 : index
    %c0_11 = arith.constant 0 : index
    %15 = vector.load %arg6[%c0_10, %c0_11] : memref<64x16xbf16, #tpu.memory_space<vmem>>, vector<64x16xbf16>
    %c0_12 = arith.constant 0 : index
    %c0_13 = arith.constant 0 : index
    %16 = vector.load %arg7[%c0_12, %c0_13] : memref<1x16xf32, #tpu.memory_space<vmem>>, vector<1x16xf32>
    %17 = arith.truncf %14 : vector<8x64xf32> to vector<8x64xbf16>
    %cst_14 = arith.constant dense<0.000000e+00> : vector<8x16xf32>
    %18 = tpu.matmul %17, %15, %cst_14 {dimension_numbers = #tpu.dot_dimension_numbers<[1], [0], [0], [1], [0, 0, 1, 1], [], []>} : vector<8x64xbf16>, vector<64x16xbf16>, vector<8x16xf32> -> vector<8x16xf32>
    %19 = vector.broadcast %16 : vector<1x16xf32> to vector<8x16xf32>
    %20 = arith.addf %18, %19 : vector<8x16xf32>
    %c0_15 = arith.constant 0 : index
    %c0_16 = arith.constant 0 : index
    %21 = vector.load %arg8[%c0_15, %c0_16] : memref<8x16xf32, #tpu.memory_space<vmem>>, vector<8x16xf32>
    tpu.vector_store %arg8[%c0_15, %c0_16], %20 {strides = array<i32>} : memref<8x16xf32, #tpu.memory_space<vmem>>, vector<8x16xf32>,
    return
  }
  func.func @transform_0(%arg0: i32) -> (i32, i32) {
    %c0_i32 = arith.constant 0 : i32
    %c0_i32_0 = arith.constant 0 : i32
    return %arg0, %c0_i32 : i32, i32
  }
  func.func @transform_1(%arg0: i32) -> (i32, i32) {
    %c0_i32 = arith.constant 0 : i32
    %c0_i32_0 = arith.constant 0 : i32
    %c0_i32_1 = arith.constant 0 : i32
    return %c0_i32, %c0_i32_0 : i32, i32
  }
  func.func @transform_2(%arg0: i32) -> (i32, i32) {
    %c0_i32 = arith.constant 0 : i32
    %c0_i32_0 = arith.constant 0 : i32
    %c0_i32_1 = arith.constant 0 : i32
    return %c0_i32, %c0_i32_0 : i32, i32
  }
  func.func @transform_3(%arg0: i32) -> (i32, i32) {
    %c0_i32 = arith.constant 0 : i32
    %c0_i32_0 = arith.constant 0 : i32
    %c0_i32_1 = arith.constant 0 : i32
    return %c0_i32, %c0_i32_0 : i32, i32
  }
  func.func @transform_4(%arg0: i32) -> (i32, i32) {
    %c0_i32 = arith.constant 0 : i32
    %c0_i32_0 = arith.constant 0 : i32
    %c0_i32_1 = arith.constant 0 : i32
    return %c0_i32, %c0_i32_0 : i32, i32
  }
  func.func @transform_5(%arg0: i32) -> (i32, i32) {
    %c0_i32 = arith.constant 0 : i32
    %c0_i32_0 = arith.constant 0 : i32
    %c0_i32_1 = arith.constant 0 : i32
    return %c0_i32, %c0_i32_0 : i32, i32
  }
  func.func @transform_6(%arg0: i32) -> (i32, i32) {
    %c0_i32 = arith.constant 0 : i32
    %c0_i32_0 = arith.constant 0 : i32
    %c0_i32_1 = arith.constant 0 : i32
    return %c0_i32, %c0_i32_0 : i32, i32
  }
  func.func @transform_7(%arg0: i32) -> (i32, i32) {
    %c0_i32 = arith.constant 0 : i32
    %c0_i32_0 = arith.constant 0 : i32
    return %arg0, %c0_i32 : i32, i32
  }
}

</mosaic_0001>

<llo_original>
// kernel: _forward.1
$region0: #{_forward.1}
  #allocation0 [shape = 'u32[]', space=smem, size = 0x4, offset = 0x4, fixed_abs, tag = 'smem constant byte address 0x4 - core index']
  #allocation1 [shape = 'u32[72,128]{1,0:T(1,128)}', space=vmem, size = 0x9000, scoped, tag = 'internal scratch']
  %s0 = inlined_call_operand.vmem [shape: f32[8,32], index: 0, kind: input, shape index: {}]
  %s1 = inlined_call_operand.hbm [shape: bf16[32,64], index: 1, kind: input, shape index: {}]
  %s2 = inlined_call_operand.vmem [shape: f32[1,64], index: 2, kind: input, shape index: {}]
  %s3 = inlined_call_operand.vmem [shape: bf16[64,64], index: 3, kind: input, shape index: {}]
  %s4 = inlined_call_operand.vmem [shape: f32[1,64], index: 4, kind: input, shape index: {}]
  %s5 = inlined_call_operand.vmem [shape: bf16[64,16], index: 5, kind: input, shape index: {}]
  %s6 = inlined_call_operand.vmem [shape: f32[1,16], index: 6, kind: input, shape index: {}]
  %s7 = inlined_call_operand.hbm [shape: f32[8,16], index: 7, kind: output, shape index: {}]
  %s8 = sld [smem:[#allocation0]]
  $region42: #{_forward.1} parent=0
    _
  %s10 = ssub.s32 1, %s8
  %s11 = scalar_select 0, %s10, %s8
  $region1: #{_forward.1} parent=0
    #allocation2 [shape = 'u8[8192]{0}', space=vmem, size = 0x2000, scoped, tag = 'input window, operand 1, single buffered']
    #allocation3 [shape = 's32[1]{0}', space=sflag, size = 0x4, scoped, tag = 'scoped memory for _forward.1']
    #allocation4 [shape = 's32[1]{0}', space=sflag, size = 0x4, scoped, tag = 'scoped memory for _forward.1']
    #allocation5 [shape = 'u8[4096]{0}', space=vmem, size = 0x1000, scoped, tag = 'output window, operand 0, single buffered']
    %12 = vsyncpa [#allocation3], 0
    %13 = vsyncpa [#allocation4], 0
    // Predicated region
    $region2: #{_forward.1} parent=1 // pred_check
      _
    $region3: #{_forward.1} parent=1 // pred_check_branch
      %15 = sbr.rel (0) target = $region5
    $region4: #{_forward.1} parent=1 // pred_region
      _
    $region5: #{_forward.1} parent=1 // pred_fallthru
      _
    // Predicated region
    $region6: #{_forward.1} parent=1 // pred_check
      _
    $region7: #{_forward.1} parent=1 // pred_check_branch
      %17 = sbr.rel (0) target = $region9
    $region8: #{_forward.1} parent=1 // pred_region
      %19 = vsyncadd [#allocation3], 0
      %s20 = sshll.u32 %s1, 4
      %s21 = int_to_ptr.hbm [resolvable:$true] %s20
      %s22 = sshll.u32 [#allocation2], 4
      %s23 = int_to_ptr.vmem [resolvable:$true] %s22
      %28 = dma.hbm_to_vmem [thread:$0]  %s21, 256, %s23, [#allocation3], 64, 64, 4
    $region9: #{_forward.1} parent=1 // pred_fallthru
      _
    // Predicated region
    $region10: #{_forward.1} parent=1 // pred_check
      _
    $region11: #{_forward.1} parent=1 // pred_check_branch
      %30 = sbr.rel (0) target = $region13
    $region12: #{_forward.1} parent=1 // pred_region
      _
    $region13: #{_forward.1} parent=1 // pred_fallthru
      _
    // Predicated region
    $region14: #{_forward.1} parent=1 // pred_check
      _
    $region15: #{_forward.1} parent=1 // pred_check_branch
      %32 = sbr.rel (0) target = $region17
    $region16: #{_forward.1} parent=1 // pred_region
      _
    $region17: #{_forward.1} parent=1 // pred_fallthru
      _
    // Predicated region
    $region18: #{_forward.1} parent=1 // pred_check
      _
    $region19: #{_forward.1} parent=1 // pred_check_branch
      %34 = sbr.rel (0) target = $region21
    $region20: #{_forward.1} parent=1 // pred_region
      _
    $region21: #{_forward.1} parent=1 // pred_fallthru
      _
    // Predicated region
    $region22: #{_forward.1} parent=1 // pred_check
      _
    $region23: #{_forward.1} parent=1 // pred_check_branch
      %36 = sbr.rel (0) target = $region25
    $region24: #{_forward.1} parent=1 // pred_region
      _
    $region25: #{_forward.1} parent=1 // pred_fallthru
      _
    // Predicated region
    $region26: #{_forward.1} parent=1 // pred_check
      _
    $region27: #{_forward.1} parent=1 // pred_check_branch
      %38 = sbr.rel (0) target = $region29
    $region28: #{_forward.1} parent=1 // pred_region
      _
    $region29: #{_forward.1} parent=1 // pred_fallthru
      _
    // Predicated region
    $region30: #{_forward.1} parent=1 // pred_check
      _
    $region31: #{_forward.1} parent=1 // pred_check_branch
      %40 = sbr.rel (0) target = $region33
    $region32: #{_forward.1} parent=1 // pred_region
      %42 = dma.done [#allocation3], 256
    $region33: #{_forward.1} parent=1 // pred_fallthru
      _
    %v44 = vld [vmem:[%s0] sm:$0xff]
    %v45 = vld [vmem:[#allocation2] sm:$0xf]
    %v46 = vld [vmem:[#allocation2 + $0x4] sm:$0xf]
    %v47 = vld [vmem:[#allocation2 + $0x8] sm:$0xf]
    %v48 = vld [vmem:[#allocation2 + $0xc] sm:$0xf]
    %v49 = vld [vmem:[%s2] sm:$0x1]
    %v50 = vpack.c.bf16 %v44, %v44
    %v52 = vperm.slane %v49, 0
    %v58 = vunpack.c.l.b16 %v45
    %v59 = vunpack.c.l.b16 %v46
    %v60 = vunpack.c.l.b16 %v47
    %v61 = vunpack.c.l.b16 %v48
    %v62 = vpack.c.b16 %v59, %v58
    %v63 = vpack.c.b16 %v61, %v60
    %vm66 = vcmask 261120
    %v68 = vsel %vm66, %v50, 0
    %70 = vmatpush.bf16.msra.mxu0 0
    %71 = vmatpush.bf16.msra.mxu0 0
    %72 = vmatpush.bf16.msra.mxu0 0
    %73 = vmatpush.bf16.msra.mxu0 0
    %74 = vmatpush.bf16.msra.mxu0 0
    %75 = vmatpush.bf16.msra.mxu0 0
    %76 = vmatpush.bf16.msra.mxu0 %v63
    %77 = vmatpush.bf16.msra.mxu0 %v62
    %78 = vmatmul.bf16.gmra.mxu0 %v68
    %v79 = vpop.f32.mrf.mxu0
    %v80 = vadd.f32 %v52, %v79
    %v81 = vpop.f32.mrf.mxu0
    %82 = vdwg.mxu0
    %v83 = vtanh.pop %v80
    %v84 = vld [vmem:[%s3] sm:$0xf]
    %v85 = vld [vmem:[%s3 + $0x4] sm:$0xf]
    %v86 = vld [vmem:[%s3 + $0x8] sm:$0xf]
    %v87 = vld [vmem:[%s3 + $0xc] sm:$0xf]
    %v88 = vld [vmem:[%s3 + $0x10] sm:$0xf]
    %v89 = vld [vmem:[%s3 + $0x14] sm:$0xf]
    %v90 = vld [vmem:[%s3 + $0x18] sm:$0xf]
    %v91 = vld [vmem:[%s3 + $0x1c] sm:$0xf]
    %v92 = vld [vmem:[%s4] sm:$0x1]
    %v93 = vpack.c.bf16 %v83, %v83
    %v95 = vperm.slane %v92, 0
    %v105 = vunpack.c.l.b16 %v84
    %v106 = vunpack.c.l.b16 %v85
    %v107 = vunpack.c.l.b16 %v86
    %v108 = vunpack.c.l.b16 %v87
    %v109 = vunpack.c.l.b16 %v88
    %v110 = vunpack.c.l.b16 %v89
    %v111 = vunpack.c.l.b16 %v90
    %v112 = vunpack.c.l.b16 %v91
    %v113 = vpack.c.b16 %v106, %v105
    %v114 = vpack.c.b16 %v108, %v107
    %v115 = vpack.c.b16 %v110, %v109
    %v116 = vpack.c.b16 %v112, %v111
    %vm121 = vcmask 523264
    %v123 = vsel %vm121, %v93, 0
    %125 = vmatpush.bf16.msra.mxu0 0
    %126 = vmatpush.bf16.msra.mxu0 0
    %127 = vmatpush.bf16.msra.mxu0 0
    %128 = vmatpush.bf16.msra.mxu0 0
    %129 = vmatpush.bf16.msra.mxu0 %v116
    %130 = vmatpush.bf16.msra.mxu0 %v115
    %131 = vmatpush.bf16.msra.mxu0 %v114
    %132 = vmatpush.bf16.msra.mxu0 %v113
    %133 = vmatmul.bf16.gmra.mxu0 %v123
    %v134 = vpop.f32.mrf.mxu0
    %v135 = vadd.f32 %v95, %v134
    %v136 = vpop.f32.mrf.mxu0
    %137 = vdwg.mxu0
    %v138 = vtanh.pop %v135
    %v139 = vld [vmem:[%s5] sm:$0xf]
    %v140 = vld [vmem:[%s5 + $0x4] sm:$0xf]
    %v141 = vld [vmem:[%s5 + $0x8] sm:$0xf]
    %v142 = vld [vmem:[%s5 + $0xc] sm:$0xf]
    %v143 = vld [vmem:[%s5 + $0x10] sm:$0xf]
    %v144 = vld [vmem:[%s5 + $0x14] sm:$0xf]
    %v145 = vld [vmem:[%s5 + $0x18] sm:$0xf]
    %v146 = vld [vmem:[%s5 + $0x1c] sm:$0xf]
    %v147 = vld [vmem:[%s6] sm:$0x1]
    %v148 = vpack.c.bf16 %v138, %v138
    %v150 = vperm.slane %v147, 0
    %v160 = vunpack.c.l.b16 %v139
    %v161 = vunpack.c.l.b16 %v140
    %v162 = vunpack.c.l.b16 %v141
    %v163 = vunpack.c.l.b16 %v142
    %v164 = vunpack.c.l.b16 %v143
    %v165 = vunpack.c.l.b16 %v144
    %v166 = vunpack.c.l.b16 %v145
    %v167 = vunpack.c.l.b16 %v146
    %v168 = vpack.c.b16 %v161, %v160
    %v169 = vpack.c.b16 %v163, %v162
    %v170 = vpack.c.b16 %v165, %v164
    %v171 = vpack.c.b16 %v167, %v166
    %v177 = vsel %vm121, %v148, 0
    %179 = vmatpush.bf16.msra.mxu0 0
    %180 = vmatpush.bf16.msra.mxu0 0
    %181 = vmatpush.bf16.msra.mxu0 0
    %182 = vmatpush.bf16.msra.mxu0 0
    %183 = vmatpush.bf16.msra.mxu0 %v171
    %184 = vmatpush.bf16.msra.mxu0 %v170
    %185 = vmatpush.bf16.msra.mxu0 %v169
    %186 = vmatpush.bf16.msra.mxu0 %v168
    %187 = vmatmul.bf16.gmra.mxu0 %v177
    %v188 = vpop.f32.mrf.mxu0
    %v189 = vadd.f32 %v150, %v188
    %v190 = vpop.f32.mrf.mxu0
    %191 = vdwg.mxu0
    %vm192 = vcmask 130048
    %193 = vst.msk [vmem:[#allocation5] sm:$0xff] %vm192, %v189
    // Predicated region
    $region34: #{_forward.1} parent=1 // pred_check
      _
    $region35: #{_forward.1} parent=1 // pred_check_branch
      %195 = sbr.rel (0) target = $region37
    $region36: #{_forward.1} parent=1 // pred_region
      %197 = vsyncadd [#allocation4], 0
      %s199 = sshll.u32 [#allocation5], 4
      %s200 = int_to_ptr.vmem [resolvable:$true] %s199
      %s201 = sshll.u32 %s7, 4
      %s202 = int_to_ptr.hbm [resolvable:$true] %s201
      %204 = dma.vmem_to_hbm [thread:$0]  %s200, 128, %s202, [#allocation4]
    $region37: #{_forward.1} parent=1 // pred_fallthru
      _
    // Predicated region
    $region38: #{_forward.1} parent=1 // pred_check
      _
    $region39: #{_forward.1} parent=1 // pred_check_branch
      %206 = sbr.rel (0) target = $region41
    $region40: #{_forward.1} parent=1 // pred_region
      %208 = dma.done [#allocation4], 128
    $region41: #{_forward.1} parent=1 // pred_fallthru
      _
    %209 = vsyncpa [#allocation3], 1
    %210 = vsyncpa [#allocation4], 1

</llo_original>
